<compile_context>
chip_gen: v7x
topology: tpu7x:2x2x1
jax: 0.10.0
libtpu: 0.0.40
codegen_flags: <defaults>
</compile_context>

<pallas_src>
import functools

import jax
import jax.numpy as jnp
from jax import lax
from jax.experimental import pallas as pl
from jax.experimental.pallas import tpu as pltpu


def _self_attn_kernel(x_tile_ref, x_full_ref, wqkv_ref, bqkv_ref, gamma_ref,
                      out_ref, attn_ref,
                      q_scr, k_scr, v_scr,
                      *, c8, tq):
    qt = pl.program_id(1)

    # Once per batch element: one fused QKV projection over the whole (N, C)
    # slab (amortizes the MXU weight push; avoids lane-sparse C//8 matmuls).
    @pl.when(qt == 0)
    def _():
        xf = x_full_ref[0].astype(jnp.bfloat16)                      # (N, C)
        w = wqkv_ref[...].astype(jnp.bfloat16)                       # (C, 2*C8+C)
        qkv = jnp.dot(xf, w, preferred_element_type=jnp.float32)
        qkv = qkv + bqkv_ref[...]                                    # (N, 2*C8+C)
        q_scr[...] = qkv[:, :c8]                                     # f32
        k_scr[...] = qkv[:, c8:2 * c8].astype(k_scr.dtype)           # bf16
        v_scr[...] = qkv[:, 2 * c8:].astype(v_scr.dtype)             # bf16

    i0 = pl.multiple_of(qt * tq, tq)
    q = q_scr[pl.ds(i0, tq), :].astype(jnp.bfloat16)                 # (TQ, C8)
    k = k_scr[...]                                                   # (N, C8)

    # energy[i, j] = q[i, :] . k[j, :] -- contract on C8 axis, no k.T relayout.
    energy = lax.dot_general(q, k,
                             dimension_numbers=(((1,), (1,)), ((), ())),
                             preferred_element_type=jnp.float32)     # (TQ, N)

    # numerically-stable softmax over last axis (matches torch.Softmax(dim=-1))
    e_max = jnp.max(energy, axis=-1, keepdims=True)
    p = jnp.exp(energy - e_max)
    attn = p * pl.reciprocal(jnp.sum(p, axis=-1, keepdims=True), approx=True)

    o = jnp.dot(attn.astype(jnp.bfloat16), v_scr[...],
                preferred_element_type=jnp.float32)                  # (TQ, C)

    gamma = gamma_ref[0]
    out_ref[0] = (gamma * o + x_tile_ref[0]).astype(out_ref.dtype)
    # NOTE: if N = W*H is not a multiple of 128 the attn store is lane-masked;
    # padding N here and slicing in the wrapper would make it lane-dense.
    attn_ref[0] = attn.astype(attn_ref.dtype)


def _pick_tq(n, max_tile=512):
    """Largest query-tile <= max_tile that divides n and satisfies the (8,128)
    sublane rule (multiple of 8, or equal to the full dim)."""
    for t in range(min(n, max_tile), 0, -1):
        if n % t == 0 and (t % 8 == 0 or t == n):
            return t
    return n


def self_attn_pallas(x_nchw, wq, bq, wk, bk, wv, bv, gamma):
    """x_nchw: (B, C, W, H) float32. Weights are matmul-layout (C_in, C_out)."""
    B, C, W, H = x_nchw.shape
    N = W * H
    C8 = wq.shape[1]
    TQ = _pick_tq(N)
    n_q_tiles = N // TQ

    # glue: NCHW -> (B, N, C); n = w*H + h (matches torch .view(B, C, W*H))
    x_bnc = jnp.transpose(x_nchw.reshape(B, C, N), (0, 2, 1))

    # Fuse the three 1x1-conv projections into one wide matmul weight/bias.
    w_qkv = jnp.concatenate([wq, wk, wv], axis=1)                    # (C, 2*C8+C)
    b_qkv = jnp.concatenate([bq, bk, bv], axis=0).reshape(1, 2 * C8 + C)

    kernel = functools.partial(_self_attn_kernel, c8=C8, tq=TQ)

    grid_spec = pltpu.PrefetchScalarGridSpec(
        num_scalar_prefetch=0,
        grid=(B, n_q_tiles),
        in_specs=[
            pl.BlockSpec((1, TQ, C), lambda b, i: (b, i, 0)),        # x query tile
            pl.BlockSpec((1, N, C), lambda b, i: (b, 0, 0)),         # x full (K/V src)
            pl.BlockSpec((C, 2 * C8 + C), lambda b, i: (0, 0)),      # fused QKV weight
            pl.BlockSpec((1, 2 * C8 + C), lambda b, i: (0, 0)),      # fused QKV bias
            pl.BlockSpec(memory_space=pltpu.MemorySpace.SMEM),       # gamma scalar
        ],
        out_specs=[
            pl.BlockSpec((1, TQ, C), lambda b, i: (b, i, 0)),        # out tile
            pl.BlockSpec((1, TQ, N), lambda b, i: (b, i, 0)),        # attention tile
        ],
        scratch_shapes=[
            pltpu.VMEM((N, C8), jnp.float32),                        # Q (full slab)
            pltpu.VMEM((N, C8), jnp.bfloat16),                       # K
            pltpu.VMEM((N, C), jnp.bfloat16),                        # V
        ],
    )

    out_bnc, attn = pl.pallas_call(
        kernel,
        out_shape=(
            jax.ShapeDtypeStruct((B, N, C), jnp.float32),
            jax.ShapeDtypeStruct((B, N, N), jnp.float32),
        ),
        grid_spec=grid_spec,
        compiler_params=pltpu.CompilerParams(
            # Query-tile axis must stay sequential ("arbitrary"): the K/V/Q
            # scratch is produced at the first tile of each batch element and
            # reused by the later tiles of that element.
            dimension_semantics=("parallel", "arbitrary"),
            # Allow large tiles on big N (safe below v7x's 64 MiB physical VMEM).
            vmem_limit_bytes=48 * 1024 * 1024,
        ),
    )(x_bnc, x_bnc, w_qkv, b_qkv, gamma)

    # glue: (B, N, C) -> NCHW
    out_nchw = jnp.transpose(out_bnc, (0, 2, 1)).reshape(B, C, W, H)
    return out_nchw, attn


def self_attn_ref(x_nchw, wq, bq, wk, bk, wv, bv, gamma):
    """Pure-JAX fp32 reference mirroring the PyTorch forward (verification)."""
    B, C, W, H = x_nchw.shape
    N = W * H
    x_bnc = jnp.transpose(x_nchw.reshape(B, C, N), (0, 2, 1))
    q = x_bnc @ wq + bq
    k = x_bnc @ wk + bk
    v = x_bnc @ wv + bv
    energy = jnp.einsum("bic,bjc->bij", q, k)
    attn = jax.nn.softmax(energy, axis=-1)
    o = jnp.einsum("bij,bjc->bic", attn, v)
    out = gamma[0] * o + x_bnc
    return jnp.transpose(out, (0, 2, 1)).reshape(B, C, W, H), attn


if __name__ == "__main__":
    # Small shapes consistent with the module: C must be divisible by 8.
    B, C, W, H = 2, 16, 8, 8
    C8 = C // 8

    key = jax.random.PRNGKey(0)
    kx, kwq, kbq, kwk, kbk, kwv, kbv = jax.random.split(key, 7)

    x = jax.random.normal(kx, (B, C, W, H), dtype=jnp.float32)

    # 1x1 conv weights (out_ch, in_ch, 1, 1) expressed as matmul weights (in_ch, out_ch)
    wq = 0.1 * jax.random.normal(kwq, (C, C8), dtype=jnp.float32)
    bq = 0.1 * jax.random.normal(kbq, (C8,), dtype=jnp.float32)
    wk = 0.1 * jax.random.normal(kwk, (C, C8), dtype=jnp.float32)
    bk = 0.1 * jax.random.normal(kbk, (C8,), dtype=jnp.float32)
    wv = 0.1 * jax.random.normal(kwv, (C, C), dtype=jnp.float32)
    bv = 0.1 * jax.random.normal(kbv, (C,), dtype=jnp.float32)
    # nn.Parameter(torch.zeros(1)) in __init__; use a nonzero deterministic value
    # here so the attention/residual path is actually exercised.
    gamma = jnp.array([0.5], dtype=jnp.float32)

    out, attn = jax.block_until_ready(
        self_attn_pallas(x, wq, bq, wk, bk, wv, bv, gamma))

    out_ref, attn_ref = self_attn_ref(x, wq, bq, wk, bk, wv, bv, gamma)
    assert out.shape == (B, C, W, H) and attn.shape == (B, W * H, W * H)
    # bf16 matmul inputs + approx reciprocal -> slightly relaxed tolerances vs fp32 ref.
    assert jnp.allclose(out, out_ref, atol=1e-2, rtol=1e-2)
    assert jnp.allclose(attn, attn_ref, atol=2e-3, rtol=2e-2)

    print("KERNEL_OK")
</pallas_src>

<mosaic_0001>
module attributes {stable_mosaic.version = 11 : i64} {
  func.func @_self_attn_kernel(%arg0: i32, %arg1: i32, %arg2: memref<1x64x16xf32, #tpu.memory_space<vmem>>, %arg3: memref<1x64x16xf32, #tpu.memory_space<vmem>>, %arg4: memref<16x20xf32, #tpu.memory_space<vmem>>, %arg5: memref<1x20xf32, #tpu.memory_space<vmem>>, %arg6: memref<1xf32, #tpu.memory_space<smem>>, %arg7: memref<1x64x16xf32, #tpu.memory_space<vmem>>, %arg8: memref<1x64x64xf32, #tpu.memory_space<vmem>>, %arg9: memref<64x2xf32, #tpu.memory_space<vmem>>, %arg10: memref<64x2xbf16, #tpu.memory_space<vmem>>, %arg11: memref<64x16xbf16, #tpu.memory_space<vmem>>) attributes {dimension_semantics = [#tpu.dimension_semantics<parallel>, #tpu.dimension_semantics<arbitrary>], iteration_bounds = array<i64: 2, 1>, scalar_prefetch = 0 : i64, scratch_operands = 3 : i64, tpu.core_type = #tpu.core_type<tc>, window_params = [{transform_indices = @transform_0, window_bounds = array<i64: 1, 64, 16>}, {transform_indices = @transform_1, window_bounds = array<i64: 1, 64, 16>}, {pipeline_mode = #tpu.pipeline_mode<synchronous>, transform_indices = @transform_2, window_bounds = array<i64: 16, 20>}, {pipeline_mode = #tpu.pipeline_mode<synchronous>, transform_indices = @transform_3, window_bounds = array<i64: 1, 20>}, {transform_indices = @transform_4, window_bounds = array<i64: 1>}, {transform_indices = @transform_5, window_bounds = array<i64: 1, 64, 16>}, {transform_indices = @transform_6, window_bounds = array<i64: 1, 64, 64>}]} {
    %c0_i32 = arith.constant 0 : i32
    %0 = arith.cmpi eq, %arg1, %c0_i32 : i32
    %1 = arith.extui %0 : i1 to i32
    %c0_i32_0 = arith.constant 0 : i32
    %2 = arith.cmpi ne, %1, %c0_i32_0 : i32
    scf.if %2 {
      %c0_18 = arith.constant 0 : index
      %c0_19 = arith.constant 0 : index
      %c0_20 = arith.constant 0 : index
      %35 = vector.load %arg3[%c0_18, %c0_19, %c0_20] : memref<1x64x16xf32, #tpu.memory_space<vmem>>, vector<1x64x16xf32>
      %36 = vector.shape_cast %35 : vector<1x64x16xf32> to vector<64x16xf32>
      %37 = arith.truncf %36 : vector<64x16xf32> to vector<64x16xbf16>
      %c0_21 = arith.constant 0 : index
      %c0_22 = arith.constant 0 : index
      %38 = vector.load %arg4[%c0_21, %c0_22] : memref<16x20xf32, #tpu.memory_space<vmem>>, vector<16x20xf32>
      %39 = arith.truncf %38 : vector<16x20xf32> to vector<16x20xbf16>
      %cst_23 = arith.constant dense<0.000000e+00> : vector<64x20xf32>
      %40 = tpu.matmul %37, %39, %cst_23 {dimension_numbers = #tpu.dot_dimension_numbers<[1], [0], [0], [1], [0, 0, 1, 1], [], []>} : vector<64x16xbf16>, vector<16x20xbf16>, vector<64x20xf32> -> vector<64x20xf32>
      %c0_24 = arith.constant 0 : index
      %c0_25 = arith.constant 0 : index
      %41 = vector.load %arg5[%c0_24, %c0_25] : memref<1x20xf32, #tpu.memory_space<vmem>>, vector<1x20xf32>
      %42 = vector.broadcast %41 : vector<1x20xf32> to vector<64x20xf32>
      %43 = arith.addf %40, %42 : vector<64x20xf32>
      %44 = vector.extract_strided_slice %43 {offsets = [0, 0], sizes = [64, 2], strides = [1, 1]} : vector<64x20xf32> to vector<64x2xf32>
      %c0_26 = arith.constant 0 : index
      %c0_27 = arith.constant 0 : index
      %45 = vector.load %arg9[%c0_26, %c0_27] : memref<64x2xf32, #tpu.memory_space<vmem>>, vector<64x2xf32>
      tpu.vector_store %arg9[%c0_26, %c0_27], %44 {strides = array<i32>} : memref<64x2xf32, #tpu.memory_space<vmem>>, vector<64x2xf32>,
      %46 = vector.extract_strided_slice %43 {offsets = [0, 2], sizes = [64, 2], strides = [1, 1]} : vector<64x20xf32> to vector<64x2xf32>
      %47 = arith.truncf %46 : vector<64x2xf32> to vector<64x2xbf16>
      %c0_28 = arith.constant 0 : index
      %c0_29 = arith.constant 0 : index
      %48 = vector.load %arg10[%c0_28, %c0_29] : memref<64x2xbf16, #tpu.memory_space<vmem>>, vector<64x2xbf16>
      tpu.vector_store %arg10[%c0_28, %c0_29], %47 {strides = array<i32>} : memref<64x2xbf16, #tpu.memory_space<vmem>>, vector<64x2xbf16>,
      %49 = vector.extract_strided_slice %43 {offsets = [0, 4], sizes = [64, 16], strides = [1, 1]} : vector<64x20xf32> to vector<64x16xf32>
      %50 = arith.truncf %49 : vector<64x16xf32> to vector<64x16xbf16>
      %c0_30 = arith.constant 0 : index
      %c0_31 = arith.constant 0 : index
      %51 = vector.load %arg11[%c0_30, %c0_31] : memref<64x16xbf16, #tpu.memory_space<vmem>>, vector<64x16xbf16>
      tpu.vector_store %arg11[%c0_30, %c0_31], %50 {strides = array<i32>} : memref<64x16xbf16, #tpu.memory_space<vmem>>, vector<64x16xbf16>,
    } else {
    }
    %c64_i32 = arith.constant 64 : i32
    %3 = arith.muli %arg1, %c64_i32 : i32
    %4 = tpu.assume_multiple %3, 64 : i32
    %5 = arith.index_cast %4 : i32 to index
    %c0 = arith.constant 0 : index
    %6 = vector.load %arg9[%5, %c0] : memref<64x2xf32, #tpu.memory_space<vmem>>, vector<64x2xf32>
    %7 = arith.truncf %6 : vector<64x2xf32> to vector<64x2xbf16>
    %c0_1 = arith.constant 0 : index
    %c0_2 = arith.constant 0 : index
    %8 = vector.load %arg10[%c0_1, %c0_2] : memref<64x2xbf16, #tpu.memory_space<vmem>>, vector<64x2xbf16>
    %cst = arith.constant dense<0.000000e+00> : vector<64x64xf32>
    %9 = tpu.matmul %7, %8, %cst {dimension_numbers = #tpu.dot_dimension_numbers<[1], [1], [0], [0], [0, 0, 1, 0], [], []>} : vector<64x2xbf16>, vector<64x2xbf16>, vector<64x64xf32> -> vector<64x64xf32>
    %cst_3 = arith.constant dense<0xFF800000> : vector<64xf32>
    %10 = vector.multi_reduction <maximumf>, %9, %cst_3 [1] : vector<64x64xf32> to vector<64xf32>
    %11 = vector.shape_cast %10 : vector<64xf32> to vector<64x1xf32>
    %12 = vector.broadcast %11 : vector<64x1xf32> to vector<64x64xf32>
    %13 = arith.subf %9, %12 : vector<64x64xf32>
    %14 = math.exp %13 : vector<64x64xf32>
    %cst_4 = arith.constant dense<0.000000e+00> : vector<64xf32>
    %15 = vector.multi_reduction <add>, %14, %cst_4 [1] : vector<64x64xf32> to vector<64xf32>
    %16 = vector.shape_cast %15 : vector<64xf32> to vector<64x1xf32>
    %17 = tpu.reciprocal %16 {approx = true} : vector<64x1xf32> -> vector<64x1xf32>
    %18 = vector.broadcast %17 : vector<64x1xf32> to vector<64x64xf32>
    %19 = arith.mulf %14, %18 : vector<64x64xf32>
    %20 = arith.truncf %19 : vector<64x64xf32> to vector<64x64xbf16>
    %c0_5 = arith.constant 0 : index
    %c0_6 = arith.constant 0 : index
    %21 = vector.load %arg11[%c0_5, %c0_6] : memref<64x16xbf16, #tpu.memory_space<vmem>>, vector<64x16xbf16>
    %cst_7 = arith.constant dense<0.000000e+00> : vector<64x16xf32>
    %22 = tpu.matmul %20, %21, %cst_7 {dimension_numbers = #tpu.dot_dimension_numbers<[1], [0], [0], [1], [0, 0, 1, 1], [], []>} : vector<64x64xbf16>, vector<64x16xbf16>, vector<64x16xf32> -> vector<64x16xf32>
    %c0_8 = arith.constant 0 : index
    %23 = memref.load %arg6[%c0_8] : memref<1xf32, #tpu.memory_space<smem>>
    %24 = vector.broadcast %23 : f32 to vector<64x16xf32>
    %25 = arith.mulf %24, %22 : vector<64x16xf32>
    %c0_9 = arith.constant 0 : index
    %c0_10 = arith.constant 0 : index
    %c0_11 = arith.constant 0 : index
    %26 = vector.load %arg2[%c0_9, %c0_10, %c0_11] : memref<1x64x16xf32, #tpu.memory_space<vmem>>, vector<1x64x16xf32>
    %27 = vector.shape_cast %26 : vector<1x64x16xf32> to vector<64x16xf32>
    %28 = arith.addf %25, %27 : vector<64x16xf32>
    %c0_12 = arith.constant 0 : index
    %c0_13 = arith.constant 0 : index
    %c0_14 = arith.constant 0 : index
    %29 = vector.load %arg7[%c0_12, %c0_13, %c0_14] : memref<1x64x16xf32, #tpu.memory_space<vmem>>, vector<1x64x16xf32>
    %30 = vector.shape_cast %29 : vector<1x64x16xf32> to vector<64x16xf32>
    %31 = vector.shape_cast %28 : vector<64x16xf32> to vector<1x64x16xf32>
    tpu.vector_store %arg7[%c0_12, %c0_13, %c0_14], %31 {strides = array<i32>} : memref<1x64x16xf32, #tpu.memory_space<vmem>>, vector<1x64x16xf32>,
    %c0_15 = arith.constant 0 : index
    %c0_16 = arith.constant 0 : index
    %c0_17 = arith.constant 0 : index
    %32 = vector.load %arg8[%c0_15, %c0_16, %c0_17] : memref<1x64x64xf32, #tpu.memory_space<vmem>>, vector<1x64x64xf32>
    %33 = vector.shape_cast %32 : vector<1x64x64xf32> to vector<64x64xf32>
    %34 = vector.shape_cast %19 : vector<64x64xf32> to vector<1x64x64xf32>
    tpu.vector_store %arg8[%c0_15, %c0_16, %c0_17], %34 {strides = array<i32>} : memref<1x64x64xf32, #tpu.memory_space<vmem>>, vector<1x64x64xf32>,
    return
  }
  func.func @transform_0(%arg0: i32, %arg1: i32) -> (i32, i32, i32) {
    %c0_i32 = arith.constant 0 : i32
    %c0_i32_0 = arith.constant 0 : i32
    return %arg0, %arg1, %c0_i32 : i32, i32, i32
  }
  func.func @transform_1(%arg0: i32, %arg1: i32) -> (i32, i32, i32) {
    %c0_i32 = arith.constant 0 : i32
    %c0_i32_0 = arith.constant 0 : i32
    %c0_i32_1 = arith.constant 0 : i32
    return %arg0, %c0_i32, %c0_i32_0 : i32, i32, i32
  }
  func.func @transform_2(%arg0: i32, %arg1: i32) -> (i32, i32) {
    %c0_i32 = arith.constant 0 : i32
    %c0_i32_0 = arith.constant 0 : i32
    %c0_i32_1 = arith.constant 0 : i32
    return %c0_i32, %c0_i32_0 : i32, i32
  }
  func.func @transform_3(%arg0: i32, %arg1: i32) -> (i32, i32) {
    %c0_i32 = arith.constant 0 : i32
    %c0_i32_0 = arith.constant 0 : i32
    %c0_i32_1 = arith.constant 0 : i32
    return %c0_i32, %c0_i32_0 : i32, i32
  }
  func.func @transform_4(%arg0: i32, %arg1: i32) -> i32 {
    %c0_i32 = arith.constant 0 : i32
    %c0_i32_0 = arith.constant 0 : i32
    return %c0_i32 : i32
  }
  func.func @transform_5(%arg0: i32, %arg1: i32) -> (i32, i32, i32) {
    %c0_i32 = arith.constant 0 : i32
    %c0_i32_0 = arith.constant 0 : i32
    return %arg0, %arg1, %c0_i32 : i32, i32, i32
  }
  func.func @transform_6(%arg0: i32, %arg1: i32) -> (i32, i32, i32) {
    %c0_i32 = arith.constant 0 : i32
    %c0_i32_0 = arith.constant 0 : i32
    return %arg0, %arg1, %c0_i32 : i32, i32, i32
  }
}

</mosaic_0001>

<llo_original>
// kernel: tpu_custom_call.1
$region0: #{tpu_custom_call.1}
  #allocation0 [shape = 'u32[]', space=smem, size = 0x4, offset = 0x4, fixed_abs, tag = 'smem constant byte address 0x4 - core index']
  #allocation1 [shape = 'u32[144,128]{1,0:T(1,128)}', space=vmem, size = 0x12000, scoped, tag = 'internal scratch']
  #allocation2 [shape = 'f32[64,2]{1,0:T(8,128)}', space=vmem, size = 0x8000, scoped, tag = 'scratch operand']
  #allocation3 [shape = 'bf16[64,2]{1,0:T(16,128)(2,1)}', space=vmem, size = 0x4000, scoped, tag = 'scratch operand']
  #allocation4 [shape = 'bf16[64,16]{1,0:T(16,128)(2,1)}', space=vmem, size = 0x4000, scoped, tag = 'scratch operand']
  #allocation5 [shape = 'f32[1]{0:T(128)S(6)}', space=smem, size = 0x200, scoped, tag = 'scoped memory for tpu_custom_call.1']
  %s0 = inlined_call_operand.vmem [shape: f32[2,64,16], index: 0, kind: input, shape index: {}]
  %s1 = inlined_call_operand.vmem [shape: f32[2,64,16], index: 1, kind: input, shape index: {}]
  %s2 = inlined_call_operand.vmem [shape: f32[16,20], index: 2, kind: input, shape index: {}]
  %s3 = inlined_call_operand.vmem [shape: f32[1,20], index: 3, kind: input, shape index: {}]
  %s4 = inlined_call_operand.<no memory space> [shape: f32[1], index: 4, kind: input, shape index: {}]
  %s5 = inlined_call_operand.vmem [shape: f32[2,64,16], index: 5, kind: output, shape index: {0}]
  %s6 = inlined_call_operand.hbm [shape: f32[2,64,64], index: 6, kind: output, shape index: {1}]
  %7 = xla_tuple %s5, %s6
  %s8 = sld [smem:[#allocation0]]
  $region65: #{tpu_custom_call.1} parent=0
    _
  %s10 = ssub.s32 1, %s8
  %s11 = scalar_select 0, %s10, %s8
  %12 = sst [smem:[#allocation5]] %s4
  $region1: #{tpu_custom_call.1} parent=0
    #allocation6 [shape = 'u8[65536]{0}', space=vmem, size = 0x10000, scoped, tag = 'output window, operand 1']
    #allocation7 [shape = 's32[2]{0}', space=sflag, size = 0x8, scoped, tag = 'scoped memory for tpu_custom_call.1']
    %13 = vsyncpa [#allocation7], 0
    %s14 = scalar_lea.sflag [#allocation7], 1
    %15 = vsyncpa %s14, 0
    loop: start=0, step=1, limit=4
    $region2: #{tpu_custom_call.1} parent=1 // loop_pre_header
      _
    $region3: #{tpu_custom_call.1} parent=1 // loop_header
      %s17 = sphi 0, %s21
      %p18 = scmp.ge.s32.totalorder %s17, 4
      %s24 = sphi 0, %s36
      %s25 = sphi 0, %s32
      %s26 = sphi 0, %s24
      %s27 = sphi 0, %s25
      %s28 = sphi 0, %s26
      %s29 = sphi 0, %s27
      %s41 = sphi 0, %s43
      %s44 = sphi 0, %s41
      %s45 = sphi 0, %s44
      %s61 = sphi 0, %s45
      %s67 = sphi 0, %s69
      %s70 = sphi 0, %s67
      %s71 = sphi 0, %s70
      %s87 = sphi 0, %s71
      %s91 = sphi 0, %s91
      %s93 = sphi 0, %s91
      %s94 = sphi 0, %s93
      %s108 = sphi 0, %s94
      %s112 = sphi 0, %s112
      %s114 = sphi 0, %s112
      %s115 = sphi 0, %s114
      %s129 = sphi 0, %s115
      %s133 = sphi 0, %s133
      %s135 = sphi 0, %s133
      %s136 = sphi 0, %s135
      %s150 = sphi 0, %s136
      %s158 = sphi 0, %s160
      %s161 = sphi 0, %s158
      %s162 = sphi 0, %s161
      %s178 = sphi 0, %s162
      %s186 = sphi 0, %s188
      %s189 = sphi 0, %s186
      %s190 = sphi 0, %s189
      %s206 = sphi 0, %s190
    $region4: #{tpu_custom_call.1} parent=1 // loop_header_branch
      %20 = sbr.rel (%p18) target = $region8
    $region5: #{tpu_custom_call.1} parent=1 // loop_body
      %s22 = ssub.s32 %s17, 1
      %s23 = ssub.s32 %s17, 2
      %s30 = sadd.s32 1, %s25
      %p31 = scmp.ge.s32.totalorder %s30, 1
      %s32 = scalar_select %p31, 0, %s30
      %s33 = sadd.s32 1, %s24
      %s34 = scalar_select %p31, %s33, %s24
      %p35 = scmp.ge.s32.totalorder %s34, 2
      %s36 = scalar_select %p35, 0, %s34
      %s37 = ssub.s32 %s24, %s36
      %s38 = ssub.s32 %s25, %s32
      %s39 = sor.u32 %s37, %s38
      %p40 = scmp.eq.s32.totalorder %s39, 0
      %s42 = sadd.s32 %s41, 1
      %s43 = scalar_select %p40, %s41, %s42
      %p46 = pneg %p40
      %p47 = scmp.eq.s32.totalorder %s17, 1
      %p48 = por %p46, %p47
      %p49 = scmp.ne.s32.totalorder %s41, %s44
      %p50 = scmp.eq.s32.totalorder %s17, 0
      %p51 = por %p49, %p50
      %p52 = scmp.ne.s32.totalorder %s41, %s44
      %p53 = scmp.eq.s32.totalorder %s22, 1
      %p54 = por %p52, %p53
      %p55 = scmp.ne.s32.totalorder %s44, %s45
      %p56 = scmp.eq.s32.totalorder %s22, 0
      %p57 = por %p55, %p56
      %p58 = scmp.ne.s32.totalorder %s44, %s45
      %p59 = scmp.eq.s32.totalorder %s23, 1
      %p60 = por %p58, %p59
      %p62 = scmp.ne.s32.totalorder %s45, %s61
      %p63 = scmp.eq.s32.totalorder %s23, 0
      %p64 = por %p62, %p63
      %s65 = ssub.s32 %s24, %s36
      %p66 = scmp.eq.s32.totalorder %s65, 0
      %s68 = sadd.s32 %s67, 1
      %s69 = scalar_select %p66, %s67, %s68
      %p72 = pneg %p66
      %p73 = scmp.eq.s32.totalorder %s17, 1
      %p74 = por %p72, %p73
      %p75 = scmp.ne.s32.totalorder %s67, %s70
      %p76 = scmp.eq.s32.totalorder %s17, 0
      %p77 = por %p75, %p76
      %p78 = scmp.ne.s32.totalorder %s67, %s70
      %p79 = scmp.eq.s32.totalorder %s22, 1
      %p80 = por %p78, %p79
      %p81 = scmp.ne.s32.totalorder %s70, %s71
      %p82 = scmp.eq.s32.totalorder %s22, 0
      %p83 = por %p81, %p82
      %p84 = scmp.ne.s32.totalorder %s70, %s71
      %p85 = scmp.eq.s32.totalorder %s23, 1
      %p86 = por %p84, %p85
      %p88 = scmp.ne.s32.totalorder %s71, %s87
      %p89 = scmp.eq.s32.totalorder %s23, 0
      %p90 = por %p88, %p89
      %s92 = sadd.s32 %s91, 1
      %p95 = scmp.eq.s32.totalorder %s17, 1
      %p96 = scmp.ne.s32.totalorder %s91, %s93
      %p97 = scmp.eq.s32.totalorder %s17, 0
      %p98 = por %p96, %p97
      %p99 = scmp.ne.s32.totalorder %s91, %s93
      %p100 = scmp.eq.s32.totalorder %s22, 1
      %p101 = por %p99, %p100
      %p102 = scmp.ne.s32.totalorder %s93, %s94
      %p103 = scmp.eq.s32.totalorder %s22, 0
      %p104 = por %p102, %p103
      %p105 = scmp.ne.s32.totalorder %s93, %s94
      %p106 = scmp.eq.s32.totalorder %s23, 1
      %p107 = por %p105, %p106
      %p109 = scmp.ne.s32.totalorder %s94, %s108
      %p110 = scmp.eq.s32.totalorder %s23, 0
      %p111 = por %p109, %p110
      %s113 = sadd.s32 %s112, 1
      %p116 = scmp.eq.s32.totalorder %s17, 1
      %p117 = scmp.ne.s32.totalorder %s112, %s114
      %p118 = scmp.eq.s32.totalorder %s17, 0
      %p119 = por %p117, %p118
      %p120 = scmp.ne.s32.totalorder %s112, %s114
      %p121 = scmp.eq.s32.totalorder %s22, 1
      %p122 = por %p120, %p121
      %p123 = scmp.ne.s32.totalorder %s114, %s115
      %p124 = scmp.eq.s32.totalorder %s22, 0
      %p125 = por %p123, %p124
      %p126 = scmp.ne.s32.totalorder %s114, %s115
      %p127 = scmp.eq.s32.totalorder %s23, 1
      %p128 = por %p126, %p127
      %p130 = scmp.ne.s32.totalorder %s115, %s129
      %p131 = scmp.eq.s32.totalorder %s23, 0
      %p132 = por %p130, %p131
      %s134 = sadd.s32 %s133, 1
      %p137 = scmp.eq.s32.totalorder %s17, 1
      %p138 = scmp.ne.s32.totalorder %s133, %s135
      %p139 = scmp.eq.s32.totalorder %s17, 0
      %p140 = por %p138, %p139
      %p141 = scmp.ne.s32.totalorder %s133, %s135
      %p142 = scmp.eq.s32.totalorder %s22, 1
      %p143 = por %p141, %p142
      %p144 = scmp.ne.s32.totalorder %s135, %s136
      %p145 = scmp.eq.s32.totalorder %s22, 0
      %p146 = por %p144, %p145
      %p147 = scmp.ne.s32.totalorder %s135, %s136
      %p148 = scmp.eq.s32.totalorder %s23, 1
      %p149 = por %p147, %p148
      %p151 = scmp.ne.s32.totalorder %s136, %s150
      %p152 = scmp.eq.s32.totalorder %s23, 0
      %p153 = por %p151, %p152
      %s154 = ssub.s32 %s24, %s36
      %s155 = ssub.s32 %s25, %s32
      %s156 = sor.u32 %s154, %s155
      %p157 = scmp.eq.s32.totalorder %s156, 0
      %s159 = sadd.s32 %s158, 1
      %s160 = scalar_select %p157, %s158, %s159
      %p163 = pneg %p157
      %p164 = scmp.eq.s32.totalorder %s17, 1
      %p165 = por %p163, %p164
      %p166 = scmp.ne.s32.totalorder %s158, %s161
      %p167 = scmp.eq.s32.totalorder %s17, 0
      %p168 = por %p166, %p167
      %p169 = scmp.ne.s32.totalorder %s158, %s161
      %p170 = scmp.eq.s32.totalorder %s22, 1
      %p171 = por %p169, %p170
      %p172 = scmp.ne.s32.totalorder %s161, %s162
      %p173 = scmp.eq.s32.totalorder %s22, 0
      %p174 = por %p172, %p173
      %p175 = scmp.ne.s32.totalorder %s161, %s162
      %p176 = scmp.eq.s32.totalorder %s23, 1
      %p177 = por %p175, %p176
      %p179 = scmp.ne.s32.totalorder %s162, %s178
      %p180 = scmp.eq.s32.totalorder %s23, 0
      %p181 = por %p179, %p180
      %s182 = ssub.s32 %s24, %s36
      %s183 = ssub.s32 %s25, %s32
      %s184 = sor.u32 %s182, %s183
      %p185 = scmp.eq.s32.totalorder %s184, 0
      %s187 = sadd.s32 %s186, 1
      %s188 = scalar_select %p185, %s186, %s187
      %p191 = pneg %p185
      %p192 = scmp.eq.s32.totalorder %s17, 1
      %p193 = por %p191, %p192
      %p194 = scmp.ne.s32.totalorder %s186, %s189
      %p195 = scmp.eq.s32.totalorder %s17, 0
      %p196 = por %p194, %p195
      %p197 = scmp.ne.s32.totalorder %s186, %s189
      %p198 = scmp.eq.s32.totalorder %s22, 1
      %p199 = por %p197, %p198
      %p200 = scmp.ne.s32.totalorder %s189, %s190
      %p201 = scmp.eq.s32.totalorder %s22, 0
      %p202 = por %p200, %p201
      %p203 = scmp.ne.s32.totalorder %s189, %s190
      %p204 = scmp.eq.s32.totalorder %s23, 1
      %p205 = por %p203, %p204
      %p207 = scmp.ne.s32.totalorder %s190, %s206
      %p208 = scmp.eq.s32.totalorder %s23, 0
      %p209 = por %p207, %p208
      %p210 = scmp.le.s32.totalorder 1, %s17
      %p211 = scmp.lt.s32.totalorder %s17, 3
      %p212 = pnand %p210, %p211
      %p213 = pneg %p212
      // Predicated region
      $region9: #{tpu_custom_call.1} parent=5 // pred_check
        _
      $region10: #{tpu_custom_call.1} parent=5 // pred_check_branch
        %215 = sbr.rel (%p212) target = $region12
      $region11: #{tpu_custom_call.1} parent=5 // pred_region
        %s216 = ssub.s32 %s17, 1
        // Predicated region
        $region13: #{tpu_custom_call.1} parent=11 // pred_check
          %p217 = pneg %p104
        $region14: #{tpu_custom_call.1} parent=11 // pred_check_branch
          %219 = sbr.rel (%p217) target = $region16
        $region15: #{tpu_custom_call.1} parent=11 // pred_region
          _
        $region16: #{tpu_custom_call.1} parent=11 // pred_fallthru
          _
        // Predicated region
        $region17: #{tpu_custom_call.1} parent=11 // pred_check
          %p220 = pneg %p125
        $region18: #{tpu_custom_call.1} parent=11 // pred_check_branch
          %222 = sbr.rel (%p220) target = $region20
        $region19: #{tpu_custom_call.1} parent=11 // pred_region
          _
        $region20: #{tpu_custom_call.1} parent=11 // pred_fallthru
          _
        // Predicated region
        $region21: #{tpu_custom_call.1} parent=11 // pred_check
          %p223 = pneg %p146
        $region22: #{tpu_custom_call.1} parent=11 // pred_check_branch
          %225 = sbr.rel (%p223) target = $region24
        $region23: #{tpu_custom_call.1} parent=11 // pred_region
          _
        $region24: #{tpu_custom_call.1} parent=11 // pred_fallthru
          _
      $region12: #{tpu_custom_call.1} parent=5 // pred_fallthru
        _
      %p226 = scmp.lt.s32.totalorder %s17, 2
      // Predicated region
      $region25: #{tpu_custom_call.1} parent=5 // pred_check
        %p227 = pneg %p226
      $region26: #{tpu_custom_call.1} parent=5 // pred_check_branch
        %229 = sbr.rel (%p227) target = $region28
      $region27: #{tpu_custom_call.1} parent=5 // pred_region
        // Predicated region
        $region29: #{tpu_custom_call.1} parent=27 // pred_check
          %p230 = pneg %p51
        $region30: #{tpu_custom_call.1} parent=27 // pred_check_branch
          %232 = sbr.rel (%p230) target = $region32
        $region31: #{tpu_custom_call.1} parent=27 // pred_region
          %s233 = smul.u32 8, %s25
          %p234 = scmp.lt.s32.totalorder %s24, 1
          %s235 = scalar_select %p234, %s24, 1
          %p236 = scmp.lt.s32.totalorder %s233, 7
          %s237 = scalar_select %p236, %s233, 7
          %s238 = smul.addr %s235, 8
          %s239 = sadd.s32 %s237, %s238
          %s240 = smul.addr %s239, 8
          %s241 = scalar_lea.vmem %s0, %s240
          %s242 = smul.u32 8, %s25
        $region32: #{tpu_custom_call.1} parent=27 // pred_fallthru
          _
        // Predicated region
        $region33: #{tpu_custom_call.1} parent=27 // pred_check
          %p243 = pneg %p77
        $region34: #{tpu_custom_call.1} parent=27 // pred_check_branch
          %245 = sbr.rel (%p243) target = $region36
        $region35: #{tpu_custom_call.1} parent=27 // pred_region
          %p246 = scmp.lt.s32.totalorder %s24, 1
          %s247 = scalar_select %p246, %s24, 1
          %s248 = smul.addr %s247, 8
          %s249 = smul.addr %s248, 8
          %s250 = scalar_lea.vmem %s1, %s249
        $region36: #{tpu_custom_call.1} parent=27 // pred_fallthru
          _
      $region28: #{tpu_custom_call.1} parent=5 // pred_fallthru
        _
      %p251 = scmp.le.s32.totalorder 1, %s17
      %p252 = scmp.lt.s32.totalorder %s17, 3
      %p253 = pnand %p251, %p252
      %p254 = pneg %p253
      // Predicated region
      $region37: #{tpu_custom_call.1} parent=5 // pred_check
        _
      $region38: #{tpu_custom_call.1} parent=5 // pred_check_branch
        %256 = sbr.rel (%p253) target = $region40
      $region39: #{tpu_custom_call.1} parent=5 // pred_region
        %s257 = ssub.s32 %s17, 1
        %s258 = smul.u32 8, %s27
        %p259 = scmp.lt.s32.totalorder %s26, 1
        %s260 = scalar_select %p259, %s26, 1
        %p261 = scmp.lt.s32.totalorder %s258, 7
        %s262 = scalar_select %p261, %s258, 7
        %s263 = smul.addr %s260, 8
        %s264 = sadd.s32 %s262, %s263
        %s265 = smul.addr %s264, 8
        %s266 = scalar_lea.vmem %s0, %s265
        %p267 = pneg %p57
        %p268 = pneg %p54
        %p269 = scmp.lt.s32.totalorder %s26, 1
        %s270 = scalar_select %p269, %s26, 1
        %s271 = smul.addr %s270, 8
        %s272 = smul.addr %s271, 8
        %s273 = scalar_lea.vmem %s1, %s272
        %p274 = pneg %p83
        %p275 = pneg %p80
        %p276 = pneg %p104
        %p277 = pneg %p101
        %p278 = pneg %p125
        %p279 = pneg %p122
        %p280 = pneg %p146
        %p281 = pneg %p143
        %p282 = pneg %p174
        %p283 = pneg %p171
        %s284 = smul.u32 8, %s27
        %p285 = scmp.lt.s32.totalorder %s26, 1
        %s286 = scalar_select %p285, %s26, 1
        %p287 = scmp.lt.s32.totalorder %s284, 7
        %s288 = scalar_select %p287, %s284, 7
        %s289 = smul.addr %s286, 8
        %s290 = sadd.s32 %s288, %s289
        %s291 = smul.addr %s290, 8
        %s292 = scalar_lea.vmem %s5, %s291
        %p293 = pneg %p202
        %p294 = pneg %p199
        %s295 = sand.u32 %s189, 1
        %s296 = scalar_lea.sflag [#allocation7], %s295
        %s297 = sand.u32 %s189, 1
        %s298 = smul.addr %s297, 64
        %s299 = scalar_lea.vmem [#allocation6], %s298
        %s300 = smul.u32 8, %s27
        %p301 = scmp.lt.s32.totalorder %s26, 1
        %s302 = scalar_select %p301, %s26, 1
        %p303 = scmp.lt.s32.totalorder %s300, 7
        %s304 = scalar_select %p303, %s300, 7
        %s305 = smul.addr %s302, 8
        %s306 = sadd.s32 %s304, %s305
        %s307 = smul.addr %s306, 8
        %s308 = scalar_lea.vmem %s0, %s307
        %s309 = smul.u32 8, %s27
        %p310 = scmp.lt.s32.totalorder %s26, 1
        %s311 = scalar_select %p310, %s26, 1
        %s312 = smul.addr %s311, 8
        %s313 = smul.addr %s312, 8
        %s314 = scalar_lea.vmem %s1, %s313
        %s315 = smul.u32 8, %s27
        %p316 = scmp.lt.s32.totalorder %s26, 1
        %s317 = scalar_select %p316, %s26, 1
        %p318 = scmp.lt.s32.totalorder %s315, 7
        %s319 = scalar_select %p318, %s315, 7
        %s320 = smul.addr %s317, 8
        %s321 = sadd.s32 %s319, %s320
        %s322 = smul.addr %s321, 8
        %s323 = scalar_lea.vmem %s5, %s322
        %s324 = smul.u32 8, %s27
        %s325 = smul.u32 8, %s27
        %p327 = scmp.eq.s32.totalorder %s27, 0
        // Predicated region
        $region41: #{tpu_custom_call.1} parent=39 // pred_check
          %p328 = pneg %p327
        $region42: #{tpu_custom_call.1} parent=39 // pred_check_branch
          %330 = sbr.rel (%p328) target = $region44
        $region43: #{tpu_custom_call.1} parent=39 // pred_region
          %v331 = vld [vmem:[%s314] sm:$0xff]
          %v332 = vld [vmem:[%s314 + $0x8] sm:$0xff]
          %v333 = vld [vmem:[%s314 + $0x10] sm:$0xff]
          %v334 = vld [vmem:[%s314 + $0x18] sm:$0xff]
          %v335 = vld [vmem:[%s314 + $0x20] sm:$0xff]
          %v336 = vld [vmem:[%s314 + $0x28] sm:$0xff]
          %v337 = vld [vmem:[%s314 + $0x30] sm:$0xff]
          %v338 = vld [vmem:[%s314 + $0x38] sm:$0xff]
          %v339 = vpack.c.bf16 %v332, %v331
          %v340 = vpack.c.bf16 %v334, %v333
          %v341 = vpack.c.bf16 %v336, %v335
          %v342 = vpack.c.bf16 %v338, %v337
          %v343 = vld [vmem:[%s2] sm:$0xff]
          %v344 = vld [vmem:[%s2 + $0x8] sm:$0xff]
          %v345 = vpack.c.bf16 %v344, %v343
          %v346 = vld [vmem:[%s3] sm:$0x1]
          %v348 = vlaneseq
          %v349 = vshrl.u32 %v348, 7
          %v350 = vsub.s32 0, %v349
          %v351 = vrot.slane %v346, %v350
          %vm353 = vcmask 130048
          %v355 = vsel %vm353, %v339, 0
          %v358 = vsel %vm353, %v340, 0
          %v361 = vsel %vm353, %v341, 0
          %v364 = vsel %vm353, %v342, 0
          %366 = vmatprep.subr.bf16.mxu0 0
          %367 = vmatpush1.bf16.msra.mxu0 %v345
          %368 = vmatprep.subr.bf16.mxu0 0
          %369 = vmatpush1.bf16.msra.mxu0 0
          %370 = vmatprep.subr.bf16.mxu0 0
          %371 = vmatpush1.bf16.msra.mxu0 0
          %372 = vmatprep.subr.bf16.mxu0 0
          %373 = vmatpush1.bf16.msra.mxu0 0
          %374 = vmatprep.subr.bf16.mxu0 0
          %375 = vmatpush1.bf16.msra.mxu0 0
          %376 = vmatprep.subr.bf16.mxu0 0
          %377 = vmatpush1.bf16.msra.mxu0 0
          %378 = vmatprep.subr.bf16.mxu0 0
          %379 = vmatpush1.bf16.msra.mxu0 0
          %380 = vmatprep.subr.bf16.mxu0 0
          %381 = vmatpush1.bf16.msra.mxu0 0
          %382 = vmatprep.subr.bf16.mxu0 0
          %383 = vmatpush1.bf16.msra.mxu0 0
          %384 = vmatprep.subr.bf16.mxu0 0
          %385 = vmatpush1.bf16.msra.mxu0 0
          %386 = vmatprep.subr.bf16.mxu0 0
          %387 = vmatpush1.bf16.msra.mxu0 0
          %388 = vmatprep.subr.bf16.mxu0 0
          %389 = vmatpush1.bf16.msra.mxu0 0
          %390 = vmatprep.subr.bf16.mxu0 0
          %391 = vmatpush1.bf16.msra.mxu0 0
          %392 = vmatprep.subr.bf16.mxu0 0
          %393 = vmatpush1.bf16.msra.mxu0 0
          %394 = vmatprep.subr.bf16.mxu0 0
          %395 = vmatpush1.bf16.msra.mxu0 0
          %396 = vmatprep.subr.bf16.mxu0 0
          %397 = vmatpush1.bf16.msra.mxu0 0
          %398 = vmatprep.mubr.bf16.mxu0 0
          %399 = vmatmul.mubr.bf16.gmra.mrb[0].mxu0 %v355
          %v400 = vpop.f32.mrb[0].mxu0
          %v401 = vadd.f32 %v351, %v400
          %v402 = vpop.f32.mrb[0].mxu0
          %v403 = vpop.f32.mrb[0].mxu0
          %v404 = vadd.f32 %v351, %v403
          %v405 = vpop.f32.mrb[0].mxu0
          %406 = vmatprep.mubr.bf16.mxu0 0
          %407 = vmatmul.mubr.bf16.gmra.mrb[0].mxu0 %v358
          %v408 = vpop.f32.mrb[0].mxu0
          %v409 = vadd.f32 %v351, %v408
          %v410 = vpop.f32.mrb[0].mxu0
          %v411 = vpop.f32.mrb[0].mxu0
          %v412 = vadd.f32 %v351, %v411
          %v413 = vpop.f32.mrb[0].mxu0
          %414 = vmatprep.mubr.bf16.mxu0 0
          %415 = vmatmul.mubr.bf16.gmra.mrb[0].mxu0 %v361
          %v416 = vpop.f32.mrb[0].mxu0
          %v417 = vadd.f32 %v351, %v416
          %v418 = vpop.f32.mrb[0].mxu0
          %v419 = vpop.f32.mrb[0].mxu0
          %v420 = vadd.f32 %v351, %v419
          %v421 = vpop.f32.mrb[0].mxu0
          %422 = vmatprep.mubr.bf16.mxu0 0
          %423 = vmatmul.mubr.bf16.gmra.mrb[0].mxu0 %v364
          %v424 = vpop.f32.mrb[0].mxu0
          %v425 = vadd.f32 %v351, %v424
          %v426 = vpop.f32.mrb[0].mxu0
          %v427 = vpop.f32.mrb[0].mxu0
          %v428 = vadd.f32 %v351, %v427
          %v429 = vpop.f32.mrb[0].mxu0
          %430 = vdwg.mxu0
          %vm431 = vcmask 15360
          %432 = vst.msk [vmem:[#allocation2] sm:$0xff] %vm431, %v401
          %433 = vst.msk [vmem:[#allocation2 + $0x8] sm:$0xff] %vm431, %v404
          %434 = vst.msk [vmem:[#allocation2 + $0x10] sm:$0xff] %vm431, %v409
          %435 = vst.msk [vmem:[#allocation2 + $0x18] sm:$0xff] %vm431, %v412
          %436 = vst.msk [vmem:[#allocation2 + $0x20] sm:$0xff] %vm431, %v417
          %437 = vst.msk [vmem:[#allocation2 + $0x28] sm:$0xff] %vm431, %v420
          %438 = vst.msk [vmem:[#allocation2 + $0x30] sm:$0xff] %vm431, %v425
          %439 = vst.msk [vmem:[#allocation2 + $0x38] sm:$0xff] %vm431, %v428
          %v440 = vpack.c.bf16 %v404, %v401
          %v441 = vpack.c.bf16 %v412, %v409
          %v442 = vpack.c.bf16 %v420, %v417
          %v443 = vpack.c.bf16 %v428, %v425
          %448 = vrot.lane.b32.xlu0 %v440, 126
          %v449 = vpop.permute.xlu0 %448
          %450 = vrot.lane.b32.xlu0 %v441, 126
          %v451 = vpop.permute.xlu0 %450
          %452 = vrot.lane.b32.xlu0 %v442, 126
          %v453 = vpop.permute.xlu0 %452
          %454 = vrot.lane.b32.xlu0 %v443, 126
          %v455 = vpop.permute.xlu0 %454
          %460 = vst.msk [vmem:[#allocation3] sm:$0xff] %vm431, %v449
          %461 = vst.msk [vmem:[#allocation3 + $0x8] sm:$0xff] %vm431, %v451
          %462 = vst.msk [vmem:[#allocation3 + $0x10] sm:$0xff] %vm431, %v453
          %463 = vst.msk [vmem:[#allocation3 + $0x18] sm:$0xff] %vm431, %v455
          %464 = vrot.lane.b32.xlu0 %v440, 124
          %v465 = vpop.permute.xlu0 %464
          %466 = vrot.lane.b32.xlu0 %v441, 124
          %v467 = vpop.permute.xlu0 %466
          %468 = vrot.lane.b32.xlu0 %v442, 124
          %v469 = vpop.permute.xlu0 %468
          %470 = vrot.lane.b32.xlu0 %v443, 124
          %v471 = vpop.permute.xlu0 %470
          %476 = vst.msk [vmem:[#allocation4] sm:$0xff] %vm353, %v465
          %477 = vst.msk [vmem:[#allocation4 + $0x8] sm:$0xff] %vm353, %v467
          %478 = vst.msk [vmem:[#allocation4 + $0x10] sm:$0xff] %vm353, %v469
          %479 = vst.msk [vmem:[#allocation4 + $0x18] sm:$0xff] %vm353, %v471
        $region44: #{tpu_custom_call.1} parent=39 // pred_fallthru
          _
        %s480 = smul.u32 %s27, 64
        %s481 = scalar_lea.vmem [#allocation2], %s480
        %v482 = vld [vmem:[%s481] sm:$0xff]
        %v483 = vld [vmem:[%s481 + $0x8] sm:$0xff]
        %v484 = vld [vmem:[%s481 + $0x10] sm:$0xff]
        %v485 = vld [vmem:[%s481 + $0x18] sm:$0xff]
        %v486 = vld [vmem:[%s481 + $0x20] sm:$0xff]
        %v487 = vld [vmem:[%s481 + $0x28] sm:$0xff]
        %v488 = vld [vmem:[%s481 + $0x30] sm:$0xff]
        %v489 = vld [vmem:[%s481 + $0x38] sm:$0xff]
        %v490 = vpack.c.bf16 %v483, %v482
        %v491 = vpack.c.bf16 %v485, %v484
        %v492 = vpack.c.bf16 %v487, %v486
        %v493 = vpack.c.bf16 %v489, %v488
        %v494 = vld [vmem:[#allocation3] sm:$0xff]
        %v495 = vld [vmem:[#allocation3 + $0x8] sm:$0xff]
        %v496 = vld [vmem:[#allocation3 + $0x10] sm:$0xff]
        %v497 = vld [vmem:[#allocation3 + $0x18] sm:$0xff]
        %vm498 = vcmask 15360
        %v500 = vsel %vm498, %v490, 0
        %v503 = vsel %vm498, %v491, 0
        %v506 = vsel %vm498, %v492, 0
        %v509 = vsel %vm498, %v493, 0
        %v512 = vsel %vm498, %v494, 0
        %v515 = vsel %vm498, %v495, 0
        %v518 = vsel %vm498, %v496, 0
        %v521 = vsel %vm498, %v497, 0
        %523 = vmatprep.subr.bf16.mxu0 0
        %524 = vmatpush1.bf16.xpose.msra.mxu0 %v512
        %525 = vmatprep.subr.bf16.mxu0 0
        %526 = vmatpush1.bf16.xpose.msra.mxu0 %v515
        %527 = vmatprep.subr.bf16.mxu0 0
        %528 = vmatpush1.bf16.xpose.msra.mxu0 %v518
        %529 = vmatprep.subr.bf16.mxu0 0
        %530 = vmatpush1.bf16.xpose.msra.mxu0 %v521
        %531 = vmatprep.subr.bf16.mxu0 0
        %532 = vmatpush1.bf16.xpose.msra.mxu0 0
        %533 = vmatprep.subr.bf16.mxu0 0
        %534 = vmatpush1.bf16.xpose.msra.mxu0 0
        %535 = vmatprep.subr.bf16.mxu0 0
        %536 = vmatpush1.bf16.xpose.msra.mxu0 0
        %537 = vmatprep.subr.bf16.mxu0 0
        %538 = vmatpush1.bf16.xpose.msra.mxu0 0
        %539 = vmatprep.subr.bf16.mxu0 0
        %540 = vmatpush1.bf16.xpose.msra.mxu0 0
        %541 = vmatprep.subr.bf16.mxu0 0
        %542 = vmatpush1.bf16.xpose.msra.mxu0 0
        %543 = vmatprep.subr.bf16.mxu0 0
        %544 = vmatpush1.bf16.xpose.msra.mxu0 0
        %545 = vmatprep.subr.bf16.mxu0 0
        %546 = vmatpush1.bf16.xpose.msra.mxu0 0
        %547 = vmatprep.subr.bf16.mxu0 0
        %548 = vmatpush1.bf16.xpose.msra.mxu0 0
        %549 = vmatprep.subr.bf16.mxu0 0
        %550 = vmatpush1.bf16.xpose.msra.mxu0 0
        %551 = vmatprep.subr.bf16.mxu0 0
        %552 = vmatpush1.bf16.xpose.msra.mxu0 0
        %553 = vmatprep.subr.bf16.mxu0 0
        %554 = vmatpush1.bf16.xpose.msra.mxu0 0
        %555 = vmatprep.mubr.bf16.mxu0 0
        %556 = vmatmul.mubr.bf16.gmra.mrb[0].mxu0 %v500
        %v557 = vpop.f32.mrb[0].mxu0
        %v558 = vadd.f32 0.0, %v557
        %v559 = vpop.f32.mrb[0].mxu0
        %v560 = vpop.f32.mrb[0].mxu0
        %v561 = vadd.f32 0.0, %v560
        %v562 = vpop.f32.mrb[0].mxu0
        %563 = vmatprep.mubr.bf16.mxu0 0
        %564 = vmatmul.mubr.bf16.gmra.mrb[0].mxu0 %v503
        %v565 = vpop.f32.mrb[0].mxu0
        %v566 = vadd.f32 0.0, %v565
        %v567 = vpop.f32.mrb[0].mxu0
        %v568 = vpop.f32.mrb[0].mxu0
        %v569 = vadd.f32 0.0, %v568
        %v570 = vpop.f32.mrb[0].mxu0
        %571 = vmatprep.mubr.bf16.mxu0 0
        %572 = vmatmul.mubr.bf16.gmra.mrb[0].mxu0 %v506
        %v573 = vpop.f32.mrb[0].mxu0
        %v574 = vadd.f32 0.0, %v573
        %v575 = vpop.f32.mrb[0].mxu0
        %v576 = vpop.f32.mrb[0].mxu0
        %v577 = vadd.f32 0.0, %v576
        %v578 = vpop.f32.mrb[0].mxu0
        %579 = vmatprep.mubr.bf16.mxu0 0
        %580 = vmatmul.mubr.bf16.gmra.mrb[0].mxu0 %v509
        %v581 = vpop.f32.mrb[0].mxu0
        %v582 = vadd.f32 0.0, %v581
        %v583 = vpop.f32.mrb[0].mxu0
        %v584 = vpop.f32.mrb[0].mxu0
        %v585 = vadd.f32 0.0, %v584
        %v586 = vpop.f32.mrb[0].mxu0
        %587 = vdwg.mxu0
        %vm588 = vcmask 523264
        %v589 = vsel %vm588, %v558, -inf
        %590 = vmax.xlane.f32.xlu0 %v589
        %v591 = vpop.xlane.xlu0 %590
        %v592 = vsel %vm588, %v561, -inf
        %593 = vmax.xlane.f32.xlu0 %v592
        %v594 = vpop.xlane.xlu0 %593
        %v595 = vsel %vm588, %v566, -inf
        %596 = vmax.xlane.f32.xlu0 %v595
        %v597 = vpop.xlane.xlu0 %596
        %v598 = vsel %vm588, %v569, -inf
        %599 = vmax.xlane.f32.xlu0 %v598
        %v600 = vpop.xlane.xlu0 %599
        %v601 = vsel %vm588, %v574, -inf
        %602 = vmax.xlane.f32.xlu0 %v601
        %v603 = vpop.xlane.xlu0 %602
        %v604 = vsel %vm588, %v577, -inf
        %605 = vmax.xlane.f32.xlu0 %v604
        %v606 = vpop.xlane.xlu0 %605
        %v607 = vsel %vm588, %v582, -inf
        %608 = vmax.xlane.f32.xlu0 %v607
        %v609 = vpop.xlane.xlu0 %608
        %v610 = vsel %vm588, %v585, -inf
        %611 = vmax.xlane.f32.xlu0 %v610
        %v612 = vpop.xlane.xlu0 %611
        %v613 = vsub.f32 %v558, %v591
        %v614 = vsub.f32 %v561, %v594
        %v615 = vsub.f32 %v566, %v597
        %v616 = vsub.f32 %v569, %v600
        %v617 = vsub.f32 %v574, %v603
        %v618 = vsub.f32 %v577, %v606
        %v619 = vsub.f32 %v582, %v609
        %v620 = vsub.f32 %v585, %v612
        %v621 = vmul.f32 %v613, 1.442695
        %v622 = vpow.pop %v621
        %v623 = vmul.f32 %v614, 1.442695
        %v624 = vpow.pop %v623
        %v625 = vmul.f32 %v615, 1.442695
        %v626 = vpow.pop %v625
        %v627 = vmul.f32 %v616, 1.442695
        %v628 = vpow.pop %v627
        %v629 = vmul.f32 %v617, 1.442695
        %v630 = vpow.pop %v629
        %v631 = vmul.f32 %v618, 1.442695
        %v632 = vpow.pop %v631
        %v633 = vmul.f32 %v619, 1.442695
        %v634 = vpow.pop %v633
        %v635 = vmul.f32 %v620, 1.442695
        %v636 = vpow.pop %v635
        %v637 = vsel %vm588, %v622, 0.0
        %638 = vadd.xlane.f32.xlu0 %v637
        %v639 = vpop.xlane.xlu0 %638
        %v640 = vsel %vm588, %v624, 0.0
        %641 = vadd.xlane.f32.xlu0 %v640
        %v642 = vpop.xlane.xlu0 %641
        %v643 = vsel %vm588, %v626, 0.0
        %644 = vadd.xlane.f32.xlu0 %v643
        %v645 = vpop.xlane.xlu0 %644
        %v646 = vsel %vm588, %v628, 0.0
        %647 = vadd.xlane.f32.xlu0 %v646
        %v648 = vpop.xlane.xlu0 %647
        %v649 = vsel %vm588, %v630, 0.0
        %650 = vadd.xlane.f32.xlu0 %v649
        %v651 = vpop.xlane.xlu0 %650
        %v652 = vsel %vm588, %v632, 0.0
        %653 = vadd.xlane.f32.xlu0 %v652
        %v654 = vpop.xlane.xlu0 %653
        %v655 = vsel %vm588, %v634, 0.0
        %656 = vadd.xlane.f32.xlu0 %v655
        %v657 = vpop.xlane.xlu0 %656
        %v658 = vsel %vm588, %v636, 0.0
        %659 = vadd.xlane.f32.xlu0 %v658
        %v660 = vpop.xlane.xlu0 %659
        %v661 = vrcp.pop %v639
        %v662 = vrcp.pop %v642
        %v663 = vrcp.pop %v645
        %v664 = vrcp.pop %v648
        %v665 = vrcp.pop %v651
        %v666 = vrcp.pop %v654
        %v667 = vrcp.pop %v657
        %v668 = vrcp.pop %v660
        %v669 = vmul.f32 %v622, %v661
        %v670 = vmul.f32 %v624, %v662
        %v671 = vmul.f32 %v626, %v663
        %v672 = vmul.f32 %v628, %v664
        %v673 = vmul.f32 %v630, %v665
        %v674 = vmul.f32 %v632, %v666
        %v675 = vmul.f32 %v634, %v667
        %v676 = vmul.f32 %v636, %v668
        %v677 = vpack.c.bf16 %v670, %v669
        %v678 = vpack.c.bf16 %v672, %v671
        %v679 = vpack.c.bf16 %v674, %v673
        %v680 = vpack.c.bf16 %v676, %v675
        %v681 = vld [vmem:[#allocation4] sm:$0xff]
        %v682 = vld [vmem:[#allocation4 + $0x8] sm:$0xff]
        %v683 = vld [vmem:[#allocation4 + $0x10] sm:$0xff]
        %v684 = vld [vmem:[#allocation4 + $0x18] sm:$0xff]
        %v686 = vsel %vm588, %v677, 0
        %v689 = vsel %vm588, %v678, 0
        %v692 = vsel %vm588, %v679, 0
        %v695 = vsel %vm588, %v680, 0
        %697 = vmatprep.subr.bf16.mxu0 0
        %698 = vmatpush1.bf16.msra.mxu0 %v681
        %699 = vmatprep.subr.bf16.mxu0 0
        %700 = vmatpush1.bf16.msra.mxu0 %v682
        %701 = vmatprep.subr.bf16.mxu0 0
        %702 = vmatpush1.bf16.msra.mxu0 %v683
        %703 = vmatprep.subr.bf16.mxu0 0
        %704 = vmatpush1.bf16.msra.mxu0 %v684
        %705 = vmatprep.subr.bf16.mxu0 0
        %706 = vmatpush1.bf16.msra.mxu0 0
        %707 = vmatprep.subr.bf16.mxu0 0
        %708 = vmatpush1.bf16.msra.mxu0 0
        %709 = vmatprep.subr.bf16.mxu0 0
        %710 = vmatpush1.bf16.msra.mxu0 0
        %711 = vmatprep.subr.bf16.mxu0 0
        %712 = vmatpush1.bf16.msra.mxu0 0
        %713 = vmatprep.subr.bf16.mxu0 0
        %714 = vmatpush1.bf16.msra.mxu0 0
        %715 = vmatprep.subr.bf16.mxu0 0
        %716 = vmatpush1.bf16.msra.mxu0 0
        %717 = vmatprep.subr.bf16.mxu0 0
        %718 = vmatpush1.bf16.msra.mxu0 0
        %719 = vmatprep.subr.bf16.mxu0 0
        %720 = vmatpush1.bf16.msra.mxu0 0
        %721 = vmatprep.subr.bf16.mxu0 0
        %722 = vmatpush1.bf16.msra.mxu0 0
        %723 = vmatprep.subr.bf16.mxu0 0
        %724 = vmatpush1.bf16.msra.mxu0 0
        %725 = vmatprep.subr.bf16.mxu0 0
        %726 = vmatpush1.bf16.msra.mxu0 0
        %727 = vmatprep.subr.bf16.mxu0 0
        %728 = vmatpush1.bf16.msra.mxu0 0
        %729 = vmatprep.mubr.bf16.mxu0 0
        %730 = vmatmul.mubr.bf16.gmra.mrb[0].mxu0 %v686
        %v731 = vpop.f32.mrb[0].mxu0
        %v732 = vadd.f32 0.0, %v731
        %v733 = vpop.f32.mrb[0].mxu0
        %v734 = vpop.f32.mrb[0].mxu0
        %v735 = vadd.f32 0.0, %v734
        %v736 = vpop.f32.mrb[0].mxu0
        %737 = vmatprep.mubr.bf16.mxu0 0
        %738 = vmatmul.mubr.bf16.gmra.mrb[0].mxu0 %v689
        %v739 = vpop.f32.mrb[0].mxu0
        %v740 = vadd.f32 0.0, %v739
        %v741 = vpop.f32.mrb[0].mxu0
        %v742 = vpop.f32.mrb[0].mxu0
        %v743 = vadd.f32 0.0, %v742
        %v744 = vpop.f32.mrb[0].mxu0
        %745 = vmatprep.mubr.bf16.mxu0 0
        %746 = vmatmul.mubr.bf16.gmra.mrb[0].mxu0 %v692
        %v747 = vpop.f32.mrb[0].mxu0
        %v748 = vadd.f32 0.0, %v747
        %v749 = vpop.f32.mrb[0].mxu0
        %v750 = vpop.f32.mrb[0].mxu0
        %v751 = vadd.f32 0.0, %v750
        %v752 = vpop.f32.mrb[0].mxu0
        %753 = vmatprep.mubr.bf16.mxu0 0
        %754 = vmatmul.mubr.bf16.gmra.mrb[0].mxu0 %v695
        %v755 = vpop.f32.mrb[0].mxu0
        %v756 = vadd.f32 0.0, %v755
        %v757 = vpop.f32.mrb[0].mxu0
        %v758 = vpop.f32.mrb[0].mxu0
        %v759 = vadd.f32 0.0, %v758
        %v760 = vpop.f32.mrb[0].mxu0
        %761 = vdwg.mxu0
        %s762 = sld [smem:[#allocation5]]
        %v763 = vstv %s762
        %v764 = vmul.f32 %v763, %v732
        %v765 = vmul.f32 %v763, %v735
        %v766 = vmul.f32 %v763, %v740
        %v767 = vmul.f32 %v763, %v743
        %v768 = vmul.f32 %v763, %v748
        %v769 = vmul.f32 %v763, %v751
        %v770 = vmul.f32 %v763, %v756
        %v771 = vmul.f32 %v763, %v759
        %v772 = vld [vmem:[%s308] sm:$0xff]
        %v773 = vld [vmem:[%s308 + $0x8] sm:$0xff]
        %v774 = vld [vmem:[%s308 + $0x10] sm:$0xff]
        %v775 = vld [vmem:[%s308 + $0x18] sm:$0xff]
        %v776 = vld [vmem:[%s308 + $0x20] sm:$0xff]
        %v777 = vld [vmem:[%s308 + $0x28] sm:$0xff]
        %v778 = vld [vmem:[%s308 + $0x30] sm:$0xff]
        %v779 = vld [vmem:[%s308 + $0x38] sm:$0xff]
        %v780 = vadd.f32 %v764, %v772
        %v781 = vadd.f32 %v765, %v773
        %v782 = vadd.f32 %v766, %v774
        %v783 = vadd.f32 %v767, %v775
        %v784 = vadd.f32 %v768, %v776
        %v785 = vadd.f32 %v769, %v777
        %v786 = vadd.f32 %v770, %v778
        %v787 = vadd.f32 %v771, %v779
        %vm788 = vcmask 130048
        %789 = vst.msk [vmem:[%s323] sm:$0xff] %vm788, %v780
        %790 = vst.msk [vmem:[%s323 + $0x8] sm:$0xff] %vm788, %v781
        %791 = vst.msk [vmem:[%s323 + $0x10] sm:$0xff] %vm788, %v782
        %792 = vst.msk [vmem:[%s323 + $0x18] sm:$0xff] %vm788, %v783
        %793 = vst.msk [vmem:[%s323 + $0x20] sm:$0xff] %vm788, %v784
        %794 = vst.msk [vmem:[%s323 + $0x28] sm:$0xff] %vm788, %v785
        %795 = vst.msk [vmem:[%s323 + $0x30] sm:$0xff] %vm788, %v786
        %796 = vst.msk [vmem:[%s323 + $0x38] sm:$0xff] %vm788, %v787
        %797 = vst.msk [vmem:[%s299] sm:$0xff] %vm588, %v669
        %798 = vst.msk [vmem:[%s299 + $0x8] sm:$0xff] %vm588, %v670
        %799 = vst.msk [vmem:[%s299 + $0x10] sm:$0xff] %vm588, %v671
        %800 = vst.msk [vmem:[%s299 + $0x18] sm:$0xff] %vm588, %v672
        %801 = vst.msk [vmem:[%s299 + $0x20] sm:$0xff] %vm588, %v673
        %802 = vst.msk [vmem:[%s299 + $0x28] sm:$0xff] %vm588, %v674
        %803 = vst.msk [vmem:[%s299 + $0x30] sm:$0xff] %vm588, %v675
        %804 = vst.msk [vmem:[%s299 + $0x38] sm:$0xff] %vm588, %v676
        %s805 = smul.u32 8, %s27
        %p806 = scmp.lt.s32.totalorder %s26, 1
        %s807 = scalar_select %p806, %s26, 1
        %p808 = scmp.lt.s32.totalorder %s805, 7
        %s809 = scalar_select %p808, %s805, 7
        %s810 = smul.addr %s807, 8
        %s811 = sadd.s32 %s809, %s810
        %s812 = smul.addr %s811, 8
        %s813 = scalar_lea.vmem %s5, %s812
        %s814 = sand.u32 %s189, 1
        %s815 = scalar_lea.sflag [#allocation7], %s814
        %s816 = sand.u32 %s189, 1
        %s817 = smul.addr %s816, 64
        %s818 = scalar_lea.vmem [#allocation6], %s817
        // Predicated region
        $region45: #{tpu_custom_call.1} parent=39 // pred_check
          %p819 = pneg %p171
        $region46: #{tpu_custom_call.1} parent=39 // pred_check_branch
          %821 = sbr.rel (%p819) target = $region48
        $region47: #{tpu_custom_call.1} parent=39 // pred_region
          %s822 = smul.u32 8, %s27
        $region48: #{tpu_custom_call.1} parent=39 // pred_fallthru
          _
        // Predicated region
        $region49: #{tpu_custom_call.1} parent=39 // pred_check
          %p823 = pneg %p199
        $region50: #{tpu_custom_call.1} parent=39 // pred_check_branch
          %825 = sbr.rel (%p823) target = $region52
        $region51: #{tpu_custom_call.1} parent=39 // pred_region
          %s826 = smul.u32 8, %s27
          %s828 = ssub.s32 1024, 1024
          %829 = vsyncadd %s815, %s828
          %s830 = smul.addr %s26, 8
          %s831 = sadd.s32 %s826, %s830
          %s832 = smul.addr %s831, 128
          %s833 = scalar_lea.hbm %s6, %s832
          %s834 = sshll.u32 %s818, 4
          %s835 = int_to_ptr.vmem [resolvable:$true] %s834
          %840 = dma.vmem_to_hbm [thread:$0]  %s835, 1024, %s833, %s815, 128, 128, 8
        $region52: #{tpu_custom_call.1} parent=39 // pred_fallthru
          _
      $region40: #{tpu_custom_call.1} parent=5 // pred_fallthru
        _
      %p841 = scmp.le.s32.totalorder 2, %s17
      // Predicated region
      $region53: #{tpu_custom_call.1} parent=5 // pred_check
        %p842 = pneg %p841
      $region54: #{tpu_custom_call.1} parent=5 // pred_check_branch
        %844 = sbr.rel (%p842) target = $region56
      $region55: #{tpu_custom_call.1} parent=5 // pred_region
        %s845 = ssub.s32 %s17, 2
        // Predicated region
        $region57: #{tpu_custom_call.1} parent=55 // pred_check
          %p846 = pneg %p177
        $region58: #{tpu_custom_call.1} parent=55 // pred_check_branch
          %848 = sbr.rel (%p846) target = $region60
        $region59: #{tpu_custom_call.1} parent=55 // pred_region
          %s849 = smul.u32 8, %s29
          %p850 = scmp.lt.s32.totalorder %s28, 1
          %s851 = scalar_select %p850, %s28, 1
          %p852 = scmp.lt.s32.totalorder %s849, 7
          %s853 = scalar_select %p852, %s849, 7
          %s854 = smul.addr %s851, 8
          %s855 = sadd.s32 %s853, %s854
          %s856 = smul.addr %s855, 8
          %s857 = scalar_lea.vmem %s5, %s856
        $region60: #{tpu_custom_call.1} parent=55 // pred_fallthru
          _
        // Predicated region
        $region61: #{tpu_custom_call.1} parent=55 // pred_check
          %p858 = pneg %p205
        $region62: #{tpu_custom_call.1} parent=55 // pred_check_branch
          %860 = sbr.rel (%p858) target = $region64
        $region63: #{tpu_custom_call.1} parent=55 // pred_region
          %s861 = sand.u32 %s190, 1
          %s862 = scalar_lea.sflag [#allocation7], %s861
          %s863 = sand.u32 %s190, 1
          %s864 = smul.addr %s863, 64
          %s865 = scalar_lea.vmem [#allocation6], %s864
          %866 = dma.done %s862, 1024
        $region64: #{tpu_custom_call.1} parent=55 // pred_fallthru
          _
      $region56: #{tpu_custom_call.1} parent=5 // pred_fallthru
        _
    $region6: #{tpu_custom_call.1} parent=1 // loop_footer
      %s21 = sadd.s32 1, %s17
    $region7: #{tpu_custom_call.1} parent=1 // loop_footer_branch
      %16 = sbr.rel target = $region3
    $region8: #{tpu_custom_call.1} parent=1 // loop_exit
      _
    %867 = vsyncpa [#allocation7], 1
    %s868 = scalar_lea.sflag [#allocation7], 1
    %869 = vsyncpa %s868, 1

</llo_original>
